<compile_context>
chip_gen: v7x
topology: tpu7x:2x2x1
jax: 0.10.0
libtpu: 0.0.40
codegen_flags: <defaults>
</compile_context>

<pallas_src>
import functools

import jax
import jax.numpy as jnp
from jax.experimental import pallas as pl
from jax.experimental.pallas import tpu as pltpu


# ---------------------------------------------------------------------------
# Fused Pallas kernel: MLP -> latent -> reparametrization, single output slab.
# ---------------------------------------------------------------------------
def _encoder_kernel(x_ref, w0_ref, w1_ref, w2_ref, b_ref, eps_ref, out_ref):
    h0 = w0_ref.shape[1]
    h1 = w1_ref.shape[1]
    two_zd = w2_ref.shape[1]
    zd = two_zd // 2

    # Packed biases: row 0 = b0, row 1 = b1, row 2 = b2 (zero lane-padded).
    # Static ref slices -> zero-cost views, one masked vload each.
    b0 = b_ref[0:1, :h0]
    b1 = b_ref[1:2, :h1]
    b2 = b_ref[2:3, :two_zd]

    x = x_ref[...]
    # Linear(in_dim, h0) + Tanh   (MXU matmul, f32 accumulate; tanh on EUP)
    h = jnp.tanh(jnp.dot(x, w0_ref[...],
                         preferred_element_type=jnp.float32) + b0)
    # Linear(h0, h1) + Tanh
    h = jnp.tanh(jnp.dot(h, w1_ref[...],
                         preferred_element_type=jnp.float32) + b1)
    # Linear(h1, 2 * z_dim)
    latent = jnp.dot(h, w2_ref[...],
                     preferred_element_type=jnp.float32) + b2

    mu = latent[:, :zd]
    logvar = latent[:, zd:]
    # reparametrization: mu + exp(0.5 * logvar) * eps  (eps supplied -> deterministic)
    z = mu + jnp.exp(0.5 * logvar) * eps_ref[...]

    # Single lane-dense output slab: [mu | logvar | z] = [latent | z].
    out_ref[:, :two_zd] = latent
    out_ref[:, two_zd:] = z


# ---------------------------------------------------------------------------
# Wrapper (jitted: bias packing / batch padding / output split fuse into glue
# around the single pallas_call instead of separate per-call XLA ops).
# ---------------------------------------------------------------------------
@functools.partial(jax.jit, static_argnames=("tile_b",))
def vaefcnn_encoder_forward(x, params, eps, *, tile_b=512):
    """VAEFCNN_encoder.forward: returns (mu, logvar, z)."""
    w0, b0, w1, b1, w2, b2 = params
    B, in_dim = x.shape
    h0 = w0.shape[1]
    h1 = w1.shape[1]
    two_zd = w2.shape[1]
    zd = two_zd // 2
    assert eps.shape == (B, zd)

    # Pack the three biases into a single (3, lane128) input -> 1 DMA, not 3.
    lane = -(-max(h0, h1, two_zd, 128) // 128) * 128
    b_packed = jnp.zeros((3, lane), jnp.float32)
    b_packed = b_packed.at[0, :h0].set(b0.astype(jnp.float32))
    b_packed = b_packed.at[1, :h1].set(b1.astype(jnp.float32))
    b_packed = b_packed.at[2, :two_zd].set(b2.astype(jnp.float32))

    # Batch tiling (parallel grid axis). Pad B so the grid divides exactly.
    tb = min(tile_b, max(8, -(-B // 8) * 8))
    b_pad = -(-B // tb) * tb
    if b_pad != B:
        x = jnp.pad(x, ((0, b_pad - B), (0, 0)))
        eps = jnp.pad(eps, ((0, b_pad - B), (0, 0)))
    grid = (b_pad // tb,)

    out = pl.pallas_call(
        _encoder_kernel,
        out_shape=jax.ShapeDtypeStruct((b_pad, 3 * zd), jnp.float32),
        grid_spec=pltpu.PrefetchScalarGridSpec(
            num_scalar_prefetch=0,
            grid=grid,
            in_specs=[
                pl.BlockSpec((tb, in_dim), lambda i: (i, 0)),   # x (tiled over B)
                pl.BlockSpec((in_dim, h0), lambda i: (0, 0)),   # w0 (VMEM-resident)
                pl.BlockSpec((h0, h1), lambda i: (0, 0)),       # w1 (VMEM-resident)
                pl.BlockSpec((h1, two_zd), lambda i: (0, 0)),   # w2 (VMEM-resident)
                pl.BlockSpec((3, lane), lambda i: (0, 0)),      # packed biases
                pl.BlockSpec((tb, zd), lambda i: (i, 0)),       # eps (tiled over B)
            ],
            out_specs=pl.BlockSpec((tb, 3 * zd), lambda i: (i, 0)),
        ),
        compiler_params=pltpu.CompilerParams(
            dimension_semantics=("parallel",)),
    )(x, w0, w1, w2, b_packed, eps)

    out = out[:B]
    mu = out[:, :zd]
    logvar = out[:, zd:two_zd]
    z = out[:, two_zd:]
    return mu, logvar, z


# ---------------------------------------------------------------------------
# Pure-JAX reference (correctness check)
# ---------------------------------------------------------------------------
def _reference_forward(x, params, eps):
    w0, b0, w1, b1, w2, b2 = params
    h = jnp.tanh(x @ w0 + b0)
    h = jnp.tanh(h @ w1 + b1)
    latent = h @ w2 + b2
    zd = w2.shape[1] // 2
    mu, logvar = latent[:, :zd], latent[:, zd:]
    z = mu + jnp.exp(0.5 * logvar) * eps
    return mu, logvar, z


# ---------------------------------------------------------------------------
if __name__ == "__main__":
    import numpy as np

    # Small shapes consistent with the module (flat-input FC VAE encoder).
    B, IN_DIM = 8, 64
    H_DIM = [32, 32]
    Z_DIM = 8

    key = jax.random.PRNGKey(0)
    ks = jax.random.split(key, 8)
    x = jax.random.normal(ks[0], (B, IN_DIM), jnp.float32)
    # TODO(synk): torch.randn_like(logvar) (stateful torch RNG) has no exact
    # Pallas equivalent; eps is passed in explicitly so the reparametrization
    # sample is reproducible and checkable.
    eps = jax.random.normal(ks[1], (B, Z_DIM), jnp.float32)

    # Synthetic nn.Linear parameters, stored transposed as (in, out) so the
    # kernel computes x @ W + b.
    w0 = 0.1 * jax.random.normal(ks[2], (IN_DIM, H_DIM[0]), jnp.float32)
    b0 = 0.1 * jax.random.normal(ks[3], (H_DIM[0],), jnp.float32)
    w1 = 0.1 * jax.random.normal(ks[4], (H_DIM[0], H_DIM[1]), jnp.float32)
    b1 = 0.1 * jax.random.normal(ks[5], (H_DIM[1],), jnp.float32)
    w2 = 0.1 * jax.random.normal(ks[6], (H_DIM[1], 2 * Z_DIM), jnp.float32)
    b2 = 0.1 * jax.random.normal(ks[7], (2 * Z_DIM,), jnp.float32)
    params = (w0, b0, w1, b1, w2, b2)

    mu, logvar, z = jax.block_until_ready(
        vaefcnn_encoder_forward(x, params, eps))

    # Shape checks (mirror the PyTorch forward outputs).
    assert mu.shape == (B, Z_DIM)
    assert logvar.shape == (B, Z_DIM)
    assert z.shape == (B, Z_DIM)

    # Numerical check against pure-JAX reference (all three outputs).
    ref_mu, ref_logvar, ref_z = _reference_forward(x, params, eps)
    np.testing.assert_allclose(np.asarray(mu), np.asarray(ref_mu),
                               rtol=1e-3, atol=2e-3)
    np.testing.assert_allclose(np.asarray(logvar), np.asarray(ref_logvar),
                               rtol=1e-3, atol=2e-3)
    np.testing.assert_allclose(np.asarray(z), np.asarray(ref_z),
                               rtol=1e-3, atol=2e-3)

    print("KERNEL_OK")
</pallas_src>

<mosaic_0001>
module attributes {stable_mosaic.version = 11 : i64} {
  func.func @_encoder_kernel(%arg0: i32, %arg1: memref<8x64xf32, #tpu.memory_space<vmem>>, %arg2: memref<64x32xf32, #tpu.memory_space<vmem>>, %arg3: memref<32x32xf32, #tpu.memory_space<vmem>>, %arg4: memref<32x16xf32, #tpu.memory_space<vmem>>, %arg5: memref<3x128xf32, #tpu.memory_space<vmem>>, %arg6: memref<8x8xf32, #tpu.memory_space<vmem>>, %arg7: memref<8x24xf32, #tpu.memory_space<vmem>>) attributes {dimension_semantics = [#tpu.dimension_semantics<parallel>], iteration_bounds = array<i64: 1>, scalar_prefetch = 0 : i64, scratch_operands = 0 : i64, tpu.core_type = #tpu.core_type<tc>, window_params = [{transform_indices = @transform_0, window_bounds = array<i64: 8, 64>}, {pipeline_mode = #tpu.pipeline_mode<synchronous>, transform_indices = @transform_1, window_bounds = array<i64: 64, 32>}, {pipeline_mode = #tpu.pipeline_mode<synchronous>, transform_indices = @transform_2, window_bounds = array<i64: 32, 32>}, {pipeline_mode = #tpu.pipeline_mode<synchronous>, transform_indices = @transform_3, window_bounds = array<i64: 32, 16>}, {pipeline_mode = #tpu.pipeline_mode<synchronous>, transform_indices = @transform_4, window_bounds = array<i64: 3, 128>}, {transform_indices = @transform_5, window_bounds = array<i64: 8, 8>}, {transform_indices = @transform_6, window_bounds = array<i64: 8, 24>}]} {
    %c0 = arith.constant 0 : index
    %c0_0 = arith.constant 0 : index
    %0 = vector.load %arg5[%c0, %c0_0] : memref<3x128xf32, #tpu.memory_space<vmem>>, vector<1x32xf32>
    %c1 = arith.constant 1 : index
    %c0_1 = arith.constant 0 : index
    %1 = vector.load %arg5[%c1, %c0_1] : memref<3x128xf32, #tpu.memory_space<vmem>>, vector<1x32xf32>
    %c2 = arith.constant 2 : index
    %c0_2 = arith.constant 0 : index
    %2 = vector.load %arg5[%c2, %c0_2] : memref<3x128xf32, #tpu.memory_space<vmem>>, vector<1x16xf32>
    %c0_3 = arith.constant 0 : index
    %c0_4 = arith.constant 0 : index
    %3 = vector.load %arg1[%c0_3, %c0_4] : memref<8x64xf32, #tpu.memory_space<vmem>>, vector<8x64xf32>
    %c0_5 = arith.constant 0 : index
    %c0_6 = arith.constant 0 : index
    %4 = vector.load %arg2[%c0_5, %c0_6] : memref<64x32xf32, #tpu.memory_space<vmem>>, vector<64x32xf32>
    %cst = arith.constant dense<0.000000e+00> : vector<8x32xf32>
    %5 = tpu.matmul %3, %4, %cst {dimension_numbers = #tpu.dot_dimension_numbers<[1], [0], [0], [1], [0, 0, 1, 1], [], []>} : vector<8x64xf32>, vector<64x32xf32>, vector<8x32xf32> -> vector<8x32xf32>
    %6 = vector.broadcast %0 : vector<1x32xf32> to vector<8x32xf32>
    %7 = arith.addf %5, %6 : vector<8x32xf32>
    %8 = math.tanh %7 : vector<8x32xf32>
    %c0_7 = arith.constant 0 : index
    %c0_8 = arith.constant 0 : index
    %9 = vector.load %arg3[%c0_7, %c0_8] : memref<32x32xf32, #tpu.memory_space<vmem>>, vector<32x32xf32>
    %cst_9 = arith.constant dense<0.000000e+00> : vector<8x32xf32>
    %10 = tpu.matmul %8, %9, %cst_9 {dimension_numbers = #tpu.dot_dimension_numbers<[1], [0], [0], [1], [0, 0, 1, 1], [], []>} : vector<8x32xf32>, vector<32x32xf32>, vector<8x32xf32> -> vector<8x32xf32>
    %11 = vector.broadcast %1 : vector<1x32xf32> to vector<8x32xf32>
    %12 = arith.addf %10, %11 : vector<8x32xf32>
    %13 = math.tanh %12 : vector<8x32xf32>
    %c0_10 = arith.constant 0 : index
    %c0_11 = arith.constant 0 : index
    %14 = vector.load %arg4[%c0_10, %c0_11] : memref<32x16xf32, #tpu.memory_space<vmem>>, vector<32x16xf32>
    %cst_12 = arith.constant dense<0.000000e+00> : vector<8x16xf32>
    %15 = tpu.matmul %13, %14, %cst_12 {dimension_numbers = #tpu.dot_dimension_numbers<[1], [0], [0], [1], [0, 0, 1, 1], [], []>} : vector<8x32xf32>, vector<32x16xf32>, vector<8x16xf32> -> vector<8x16xf32>
    %16 = vector.broadcast %2 : vector<1x16xf32> to vector<8x16xf32>
    %17 = arith.addf %15, %16 : vector<8x16xf32>
    %18 = vector.extract_strided_slice %17 {offsets = [0, 0], sizes = [8, 8], strides = [1, 1]} : vector<8x16xf32> to vector<8x8xf32>
    %19 = vector.extract_strided_slice %17 {offsets = [0, 8], sizes = [8, 8], strides = [1, 1]} : vector<8x16xf32> to vector<8x8xf32>
    %cst_13 = arith.constant 5.000000e-01 : f32
    %20 = vector.broadcast %cst_13 : f32 to vector<8x8xf32>
    %21 = arith.mulf %20, %19 : vector<8x8xf32>
    %22 = math.exp %21 : vector<8x8xf32>
    %c0_14 = arith.constant 0 : index
    %c0_15 = arith.constant 0 : index
    %23 = vector.load %arg6[%c0_14, %c0_15] : memref<8x8xf32, #tpu.memory_space<vmem>>, vector<8x8xf32>
    %24 = arith.mulf %22, %23 : vector<8x8xf32>
    %25 = arith.addf %18, %24 : vector<8x8xf32>
    %c0_16 = arith.constant 0 : index
    %c0_17 = arith.constant 0 : index
    %26 = vector.load %arg7[%c0_16, %c0_17] : memref<8x24xf32, #tpu.memory_space<vmem>>, vector<8x16xf32>
    tpu.vector_store %arg7[%c0_16, %c0_17], %17 {strides = array<i32>} : memref<8x24xf32, #tpu.memory_space<vmem>>, vector<8x16xf32>,
    %c0_18 = arith.constant 0 : index
    %c16 = arith.constant 16 : index
    %27 = vector.load %arg7[%c0_18, %c16] : memref<8x24xf32, #tpu.memory_space<vmem>>, vector<8x8xf32>
    tpu.vector_store %arg7[%c0_18, %c16], %25 {strides = array<i32>} : memref<8x24xf32, #tpu.memory_space<vmem>>, vector<8x8xf32>,
    return
  }
  func.func @transform_0(%arg0: i32) -> (i32, i32) {
    %c0_i32 = arith.constant 0 : i32
    %c0_i32_0 = arith.constant 0 : i32
    return %arg0, %c0_i32 : i32, i32
  }
  func.func @transform_1(%arg0: i32) -> (i32, i32) {
    %c0_i32 = arith.constant 0 : i32
    %c0_i32_0 = arith.constant 0 : i32
    %c0_i32_1 = arith.constant 0 : i32
    return %c0_i32, %c0_i32_0 : i32, i32
  }
  func.func @transform_2(%arg0: i32) -> (i32, i32) {
    %c0_i32 = arith.constant 0 : i32
    %c0_i32_0 = arith.constant 0 : i32
    %c0_i32_1 = arith.constant 0 : i32
    return %c0_i32, %c0_i32_0 : i32, i32
  }
  func.func @transform_3(%arg0: i32) -> (i32, i32) {
    %c0_i32 = arith.constant 0 : i32
    %c0_i32_0 = arith.constant 0 : i32
    %c0_i32_1 = arith.constant 0 : i32
    return %c0_i32, %c0_i32_0 : i32, i32
  }
  func.func @transform_4(%arg0: i32) -> (i32, i32) {
    %c0_i32 = arith.constant 0 : i32
    %c0_i32_0 = arith.constant 0 : i32
    %c0_i32_1 = arith.constant 0 : i32
    return %c0_i32, %c0_i32_0 : i32, i32
  }
  func.func @transform_5(%arg0: i32) -> (i32, i32) {
    %c0_i32 = arith.constant 0 : i32
    %c0_i32_0 = arith.constant 0 : i32
    return %arg0, %c0_i32 : i32, i32
  }
  func.func @transform_6(%arg0: i32) -> (i32, i32) {
    %c0_i32 = arith.constant 0 : i32
    %c0_i32_0 = arith.constant 0 : i32
    return %arg0, %c0_i32 : i32, i32
  }
}

</mosaic_0001>

<llo_original>
// kernel: vaefcnn_encoder_forward.1
$region0: #{vaefcnn_encoder_forward.1}
  #allocation0 [shape = 'u32[]', space=smem, size = 0x4, offset = 0x4, fixed_abs, tag = 'smem constant byte address 0x4 - core index']
  #allocation1 [shape = 'u32[144,128]{1,0:T(1,128)}', space=vmem, size = 0x12000, scoped, tag = 'internal scratch']
  %s0 = inlined_call_operand.vmem [shape: f32[8,64], index: 0, kind: input, shape index: {}]
  %s1 = inlined_call_operand.vmem [shape: f32[64,32], index: 1, kind: input, shape index: {}]
  %s2 = inlined_call_operand.vmem [shape: f32[32,32], index: 2, kind: input, shape index: {}]
  %s3 = inlined_call_operand.vmem [shape: f32[32,16], index: 3, kind: input, shape index: {}]
  %s4 = inlined_call_operand.vmem [shape: f32[3,128], index: 4, kind: input, shape index: {}]
  %s5 = inlined_call_operand.vmem [shape: f32[8,8], index: 5, kind: input, shape index: {}]
  %s6 = inlined_call_operand.vmem [shape: f32[8,24], index: 6, kind: output, shape index: {}]
  %s7 = sld [smem:[#allocation0]]
  $region34: #{vaefcnn_encoder_forward.1} parent=0
    _
  %s9 = ssub.s32 1, %s7
  %s10 = scalar_select 0, %s9, %s7
  // Predicated region
  $region2: #{vaefcnn_encoder_forward.1} parent=0 // pred_check
    _
  $region3: #{vaefcnn_encoder_forward.1} parent=0 // pred_check_branch
    %12 = sbr.rel (0) target = $region5
  $region4: #{vaefcnn_encoder_forward.1} parent=0 // pred_region
    _
  $region5: #{vaefcnn_encoder_forward.1} parent=0 // pred_fallthru
    _
  // Predicated region
  $region6: #{vaefcnn_encoder_forward.1} parent=0 // pred_check
    _
  $region7: #{vaefcnn_encoder_forward.1} parent=0 // pred_check_branch
    %14 = sbr.rel (0) target = $region9
  $region8: #{vaefcnn_encoder_forward.1} parent=0 // pred_region
    _
  $region9: #{vaefcnn_encoder_forward.1} parent=0 // pred_fallthru
    _
  // Predicated region
  $region10: #{vaefcnn_encoder_forward.1} parent=0 // pred_check
    _
  $region11: #{vaefcnn_encoder_forward.1} parent=0 // pred_check_branch
    %16 = sbr.rel (0) target = $region13
  $region12: #{vaefcnn_encoder_forward.1} parent=0 // pred_region
    _
  $region13: #{vaefcnn_encoder_forward.1} parent=0 // pred_fallthru
    _
  // Predicated region
  $region14: #{vaefcnn_encoder_forward.1} parent=0 // pred_check
    _
  $region15: #{vaefcnn_encoder_forward.1} parent=0 // pred_check_branch
    %18 = sbr.rel (0) target = $region17
  $region16: #{vaefcnn_encoder_forward.1} parent=0 // pred_region
    _
  $region17: #{vaefcnn_encoder_forward.1} parent=0 // pred_fallthru
    _
  // Predicated region
  $region18: #{vaefcnn_encoder_forward.1} parent=0 // pred_check
    _
  $region19: #{vaefcnn_encoder_forward.1} parent=0 // pred_check_branch
    %20 = sbr.rel (0) target = $region21
  $region20: #{vaefcnn_encoder_forward.1} parent=0 // pred_region
    _
  $region21: #{vaefcnn_encoder_forward.1} parent=0 // pred_fallthru
    _
  // Predicated region
  $region22: #{vaefcnn_encoder_forward.1} parent=0 // pred_check
    _
  $region23: #{vaefcnn_encoder_forward.1} parent=0 // pred_check_branch
    %22 = sbr.rel (0) target = $region25
  $region24: #{vaefcnn_encoder_forward.1} parent=0 // pred_region
    _
  $region25: #{vaefcnn_encoder_forward.1} parent=0 // pred_fallthru
    _
  %v23 = vld [vmem:[%s4] sm:$0x1]
  %v24 = vld [vmem:[%s4 + $0x1] sm:$0x1]
  %v25 = vld [vmem:[%s4 + $0x2] sm:$0x1]
  %v26 = vld [vmem:[%s0] sm:$0xff]
  %v27 = vld [vmem:[%s1] sm:$0xff]
  %v28 = vld [vmem:[%s1 + $0x8] sm:$0xff]
  %v29 = vld [vmem:[%s1 + $0x10] sm:$0xff]
  %v30 = vld [vmem:[%s1 + $0x18] sm:$0xff]
  %v31 = vld [vmem:[%s1 + $0x20] sm:$0xff]
  %v32 = vld [vmem:[%s1 + $0x28] sm:$0xff]
  %v33 = vld [vmem:[%s1 + $0x30] sm:$0xff]
  %v34 = vld [vmem:[%s1 + $0x38] sm:$0xff]
  %v35 = vlaneseq
  %v36 = vshrl.u32 %v35, 7
  %v37 = vsub.s32 0, %v36
  %v38 = vrot.slane %v23, %v37
  %vm39 = vcmask 523264
  %v41 = vsel %vm39, %v26, 0
  %43 = vmatprep.subr.mxu0 0.0
  %44 = vmatpush1.msra.mxu0 %v27
  %45 = vmatprep.subr.mxu0 0.0
  %46 = vmatpush1.msra.mxu0 %v28
  %47 = vmatprep.subr.mxu0 0.0
  %48 = vmatpush1.msra.mxu0 %v29
  %49 = vmatprep.subr.mxu0 0.0
  %50 = vmatpush1.msra.mxu0 %v30
  %51 = vmatprep.subr.mxu0 0.0
  %52 = vmatpush1.msra.mxu0 %v31
  %53 = vmatprep.subr.mxu0 0.0
  %54 = vmatpush1.msra.mxu0 %v32
  %55 = vmatprep.subr.mxu0 0.0
  %56 = vmatpush1.msra.mxu0 %v33
  %57 = vmatprep.subr.mxu0 0.0
  %58 = vmatpush1.msra.mxu0 %v34
  %59 = vmatprep.subr.mxu0 0.0
  %60 = vmatpush1.msra.mxu0 0.0
  %61 = vmatprep.subr.mxu0 0.0
  %62 = vmatpush1.msra.mxu0 0.0
  %63 = vmatprep.subr.mxu0 0.0
  %64 = vmatpush1.msra.mxu0 0.0
  %65 = vmatprep.subr.mxu0 0.0
  %66 = vmatpush1.msra.mxu0 0.0
  %67 = vmatprep.subr.mxu0 0.0
  %68 = vmatpush1.msra.mxu0 0.0
  %69 = vmatprep.subr.mxu0 0.0
  %70 = vmatpush1.msra.mxu0 0.0
  %71 = vmatprep.subr.mxu0 0.0
  %72 = vmatpush1.msra.mxu0 0.0
  %73 = vmatprep.subr.mxu0 0.0
  %74 = vmatpush1.msra.mxu0 0.0
  %75 = vmatprep.subr.mxu0 0.0
  %76 = vmatpush1.msra.mxu0 0.0
  %77 = vmatprep.subr.mxu0 0.0
  %78 = vmatpush1.msra.mxu0 0.0
  %79 = vmatprep.subr.mxu0 0.0
  %80 = vmatpush1.msra.mxu0 0.0
  %81 = vmatprep.subr.mxu0 0.0
  %82 = vmatpush1.msra.mxu0 0.0
  %83 = vmatprep.subr.mxu0 0.0
  %84 = vmatpush1.msra.mxu0 0.0
  %85 = vmatprep.subr.mxu0 0.0
  %86 = vmatpush1.msra.mxu0 0.0
  %87 = vmatprep.subr.mxu0 0.0
  %88 = vmatpush1.msra.mxu0 0.0
  %89 = vmatprep.subr.mxu0 0.0
  %90 = vmatpush1.msra.mxu0 0.0
  %91 = vmatprep.subr.mxu0 0.0
  %92 = vmatpush1.msra.mxu0 0.0
  %93 = vmatprep.subr.mxu0 0.0
  %94 = vmatpush1.msra.mxu0 0.0
  %95 = vmatprep.subr.mxu0 0.0
  %96 = vmatpush1.msra.mxu0 0.0
  %97 = vmatprep.subr.mxu0 0.0
  %98 = vmatpush1.msra.mxu0 0.0
  %99 = vmatprep.subr.mxu0 0.0
  %100 = vmatpush1.msra.mxu0 0.0
  %101 = vmatprep.subr.mxu0 0.0
  %102 = vmatpush1.msra.mxu0 0.0
  %103 = vmatprep.subr.mxu0 0.0
  %104 = vmatpush1.msra.mxu0 0.0
  %105 = vmatprep.subr.mxu0 0.0
  %106 = vmatpush1.msra.mxu0 0.0
  %107 = vmatprep.mubr.f32.mxu0 0.0
  %108 = vmatmul.mubr.f32.gmra.mrb[0].mxu0 %v41
  %v109 = vpop.f32.mrb[0].mxu0
  %v110 = vadd.f32 %v38, %v109
  %v111 = vpop.f32.mrb[0].mxu0
  %112 = vdwg.mxu0
  %v113 = vtanh.pop %v110
  %v114 = vld [vmem:[%s2] sm:$0xff]
  %v115 = vld [vmem:[%s2 + $0x8] sm:$0xff]
  %v116 = vld [vmem:[%s2 + $0x10] sm:$0xff]
  %v117 = vld [vmem:[%s2 + $0x18] sm:$0xff]
  %v118 = vlaneseq
  %v119 = vshrl.u32 %v118, 7
  %v120 = vsub.s32 0, %v119
  %v121 = vrot.slane %v24, %v120
  %vm122 = vcmask 261120
  %v124 = vsel %vm122, %v113, 0
  %126 = vmatprep.subr.mxu0 0.0
  %127 = vmatpush1.msra.mxu0 %v114
  %128 = vmatprep.subr.mxu0 0.0
  %129 = vmatpush1.msra.mxu0 %v115
  %130 = vmatprep.subr.mxu0 0.0
  %131 = vmatpush1.msra.mxu0 %v116
  %132 = vmatprep.subr.mxu0 0.0
  %133 = vmatpush1.msra.mxu0 %v117
  %134 = vmatprep.subr.mxu0 0.0
  %135 = vmatpush1.msra.mxu0 0.0
  %136 = vmatprep.subr.mxu0 0.0
  %137 = vmatpush1.msra.mxu0 0.0
  %138 = vmatprep.subr.mxu0 0.0
  %139 = vmatpush1.msra.mxu0 0.0
  %140 = vmatprep.subr.mxu0 0.0
  %141 = vmatpush1.msra.mxu0 0.0
  %142 = vmatprep.subr.mxu0 0.0
  %143 = vmatpush1.msra.mxu0 0.0
  %144 = vmatprep.subr.mxu0 0.0
  %145 = vmatpush1.msra.mxu0 0.0
  %146 = vmatprep.subr.mxu0 0.0
  %147 = vmatpush1.msra.mxu0 0.0
  %148 = vmatprep.subr.mxu0 0.0
  %149 = vmatpush1.msra.mxu0 0.0
  %150 = vmatprep.subr.mxu0 0.0
  %151 = vmatpush1.msra.mxu0 0.0
  %152 = vmatprep.subr.mxu0 0.0
  %153 = vmatpush1.msra.mxu0 0.0
  %154 = vmatprep.subr.mxu0 0.0
  %155 = vmatpush1.msra.mxu0 0.0
  %156 = vmatprep.subr.mxu0 0.0
  %157 = vmatpush1.msra.mxu0 0.0
  %158 = vmatprep.subr.mxu0 0.0
  %159 = vmatpush1.msra.mxu0 0.0
  %160 = vmatprep.subr.mxu0 0.0
  %161 = vmatpush1.msra.mxu0 0.0
  %162 = vmatprep.subr.mxu0 0.0
  %163 = vmatpush1.msra.mxu0 0.0
  %164 = vmatprep.subr.mxu0 0.0
  %165 = vmatpush1.msra.mxu0 0.0
  %166 = vmatprep.subr.mxu0 0.0
  %167 = vmatpush1.msra.mxu0 0.0
  %168 = vmatprep.subr.mxu0 0.0
  %169 = vmatpush1.msra.mxu0 0.0
  %170 = vmatprep.subr.mxu0 0.0
  %171 = vmatpush1.msra.mxu0 0.0
  %172 = vmatprep.subr.mxu0 0.0
  %173 = vmatpush1.msra.mxu0 0.0
  %174 = vmatprep.subr.mxu0 0.0
  %175 = vmatpush1.msra.mxu0 0.0
  %176 = vmatprep.subr.mxu0 0.0
  %177 = vmatpush1.msra.mxu0 0.0
  %178 = vmatprep.subr.mxu0 0.0
  %179 = vmatpush1.msra.mxu0 0.0
  %180 = vmatprep.subr.mxu0 0.0
  %181 = vmatpush1.msra.mxu0 0.0
  %182 = vmatprep.subr.mxu0 0.0
  %183 = vmatpush1.msra.mxu0 0.0
  %184 = vmatprep.subr.mxu0 0.0
  %185 = vmatpush1.msra.mxu0 0.0
  %186 = vmatprep.subr.mxu0 0.0
  %187 = vmatpush1.msra.mxu0 0.0
  %188 = vmatprep.subr.mxu0 0.0
  %189 = vmatpush1.msra.mxu0 0.0
  %190 = vmatprep.mubr.f32.mxu0 0.0
  %191 = vmatmul.mubr.f32.gmra.mrb[0].mxu0 %v124
  %v192 = vpop.f32.mrb[0].mxu0
  %v193 = vadd.f32 %v121, %v192
  %v194 = vpop.f32.mrb[0].mxu0
  %195 = vdwg.mxu0
  %v196 = vtanh.pop %v193
  %v197 = vld [vmem:[%s3] sm:$0xff]
  %v198 = vld [vmem:[%s3 + $0x8] sm:$0xff]
  %v199 = vld [vmem:[%s3 + $0x10] sm:$0xff]
  %v200 = vld [vmem:[%s3 + $0x18] sm:$0xff]
  %v201 = vlaneseq
  %v202 = vshrl.u32 %v201, 7
  %v203 = vsub.s32 0, %v202
  %v204 = vrot.slane %v25, %v203
  %v206 = vsel %vm122, %v196, 0
  %208 = vmatprep.subr.mxu0 0.0
  %209 = vmatpush1.msra.mxu0 %v197
  %210 = vmatprep.subr.mxu0 0.0
  %211 = vmatpush1.msra.mxu0 %v198
  %212 = vmatprep.subr.mxu0 0.0
  %213 = vmatpush1.msra.mxu0 %v199
  %214 = vmatprep.subr.mxu0 0.0
  %215 = vmatpush1.msra.mxu0 %v200
  %216 = vmatprep.subr.mxu0 0.0
  %217 = vmatpush1.msra.mxu0 0.0
  %218 = vmatprep.subr.mxu0 0.0
  %219 = vmatpush1.msra.mxu0 0.0
  %220 = vmatprep.subr.mxu0 0.0
  %221 = vmatpush1.msra.mxu0 0.0
  %222 = vmatprep.subr.mxu0 0.0
  %223 = vmatpush1.msra.mxu0 0.0
  %224 = vmatprep.subr.mxu0 0.0
  %225 = vmatpush1.msra.mxu0 0.0
  %226 = vmatprep.subr.mxu0 0.0
  %227 = vmatpush1.msra.mxu0 0.0
  %228 = vmatprep.subr.mxu0 0.0
  %229 = vmatpush1.msra.mxu0 0.0
  %230 = vmatprep.subr.mxu0 0.0
  %231 = vmatpush1.msra.mxu0 0.0
  %232 = vmatprep.subr.mxu0 0.0
  %233 = vmatpush1.msra.mxu0 0.0
  %234 = vmatprep.subr.mxu0 0.0
  %235 = vmatpush1.msra.mxu0 0.0
  %236 = vmatprep.subr.mxu0 0.0
  %237 = vmatpush1.msra.mxu0 0.0
  %238 = vmatprep.subr.mxu0 0.0
  %239 = vmatpush1.msra.mxu0 0.0
  %240 = vmatprep.subr.mxu0 0.0
  %241 = vmatpush1.msra.mxu0 0.0
  %242 = vmatprep.subr.mxu0 0.0
  %243 = vmatpush1.msra.mxu0 0.0
  %244 = vmatprep.subr.mxu0 0.0
  %245 = vmatpush1.msra.mxu0 0.0
  %246 = vmatprep.subr.mxu0 0.0
  %247 = vmatpush1.msra.mxu0 0.0
  %248 = vmatprep.subr.mxu0 0.0
  %249 = vmatpush1.msra.mxu0 0.0
  %250 = vmatprep.subr.mxu0 0.0
  %251 = vmatpush1.msra.mxu0 0.0
  %252 = vmatprep.subr.mxu0 0.0
  %253 = vmatpush1.msra.mxu0 0.0
  %254 = vmatprep.subr.mxu0 0.0
  %255 = vmatpush1.msra.mxu0 0.0
  %256 = vmatprep.subr.mxu0 0.0
  %257 = vmatpush1.msra.mxu0 0.0
  %258 = vmatprep.subr.mxu0 0.0
  %259 = vmatpush1.msra.mxu0 0.0
  %260 = vmatprep.subr.mxu0 0.0
  %261 = vmatpush1.msra.mxu0 0.0
  %262 = vmatprep.subr.mxu0 0.0
  %263 = vmatpush1.msra.mxu0 0.0
  %264 = vmatprep.subr.mxu0 0.0
  %265 = vmatpush1.msra.mxu0 0.0
  %266 = vmatprep.subr.mxu0 0.0
  %267 = vmatpush1.msra.mxu0 0.0
  %268 = vmatprep.subr.mxu0 0.0
  %269 = vmatpush1.msra.mxu0 0.0
  %270 = vmatprep.subr.mxu0 0.0
  %271 = vmatpush1.msra.mxu0 0.0
  %272 = vmatprep.mubr.f32.mxu0 0.0
  %273 = vmatmul.mubr.f32.gmra.mrb[0].mxu0 %v206
  %v274 = vpop.f32.mrb[0].mxu0
  %v275 = vadd.f32 %v204, %v274
  %v276 = vpop.f32.mrb[0].mxu0
  %277 = vdwg.mxu0
  %v278 = vmul.f32 %v275, 0.5
  %v279 = vmul.f32 %v278, 1.442695
  %v280 = vpow.pop %v279
  %v281 = vld [vmem:[%s5] sm:$0xff]
  %283 = vrot.lane.b32.xlu0 %v281, 8
  %v284 = vpop.permute.xlu0 %283
  %v286 = vmul.f32 %v280, %v284
  %288 = vrot.lane.b32.xlu0 %v286, 120
  %v289 = vpop.permute.xlu0 %288
  %v291 = vadd.f32 %v275, %v289
  %vm292 = vcmask 130048
  %293 = vst.msk [vmem:[%s6] sm:$0xff] %vm292, %v275
  %295 = vrot.lane.b32.xlu0 %v291, 16
  %v296 = vpop.permute.xlu0 %295
  %vm298 = vcmask 195712
  %299 = vst.msk [vmem:[%s6] sm:$0xff] %vm298, %v296
  // Predicated region
  $region26: #{vaefcnn_encoder_forward.1} parent=0 // pred_check
    _
  $region27: #{vaefcnn_encoder_forward.1} parent=0 // pred_check_branch
    %301 = sbr.rel (0) target = $region29
  $region28: #{vaefcnn_encoder_forward.1} parent=0 // pred_region
    _
  $region29: #{vaefcnn_encoder_forward.1} parent=0 // pred_fallthru
    _
  // Predicated region
  $region30: #{vaefcnn_encoder_forward.1} parent=0 // pred_check
    _
  $region31: #{vaefcnn_encoder_forward.1} parent=0 // pred_check_branch
    %303 = sbr.rel (0) target = $region33
  $region32: #{vaefcnn_encoder_forward.1} parent=0 // pred_region
    _
  $region33: #{vaefcnn_encoder_forward.1} parent=0 // pred_fallthru
    _

</llo_original>
